<compile_context>
chip_gen: v6e
topology: v6e:2x2x1
jax: 0.10.0
libtpu: 0.0.40
codegen_flags: <defaults>
</compile_context>

<pallas_src>
import jax
import jax.numpy as jnp
from jax.experimental import pallas as pl
from jax.experimental.pallas import tpu as pltpu

_OUT_LANES = 128  # lane-dense output slab width (multiple of 128)


def _idiot_predictor_kernel(bias_ref, x_ref, w_ref, o_ref):
    # bias_ref: SMEM (1,) scalar prefetch; x_ref: (B, D) VMEM; w_ref: (1, D) VMEM;
    # o_ref: (B, 128) VMEM lane-dense slab (only column 0 is meaningful).
    prod = x_ref[...] * w_ref[...]                       # VPU: (1, D) row broadcast over B rows
    z = jnp.sum(prod, axis=-1, keepdims=True)            # XLU lane reduction -> (B, 1)
    z = z + bias_ref[0]                                  # scalar add from SMEM
    # sigmoid via EUP exp + approximate EUP reciprocal (keeps the VALU slot free)
    sig = pl.reciprocal(1.0 + jnp.exp(-z), approx=True)  # (B, 1)
    o_ref[...] = jnp.broadcast_to(sig, o_ref.shape).astype(o_ref.dtype)


def idiot_predictor_forward(x_nchw, weight, bias):
    """Forward pass of IdiotPredictor (num_classes == 1).

    x_nchw : (B, 3, H, W) float32
    weight : (1, D) float32  -- torch nn.Linear layout (out_features, in_features)
    bias   : (1,)   float32
    """
    B = x_nchw.shape[0]
    D = x_nchw.shape[1] * x_nchw.shape[2] * x_nchw.shape[3]
    C = weight.shape[0]
    assert C == 1, "kernel is specialized for num_classes == 1"
    # TODO(synk): for num_classes > 1 switch to an MXU dot with a 128-padded
    # lane dimension on the weight/output instead of the VPU row reduction.

    x_flat = x_nchw.reshape(B, D)  # row-major reshape == torch .view

    padded = pl.pallas_call(
        _idiot_predictor_kernel,
        out_shape=jax.ShapeDtypeStruct((B, _OUT_LANES), jnp.float32),
        grid_spec=pltpu.PrefetchScalarGridSpec(
            num_scalar_prefetch=1,  # bias -> SMEM, passed first to the kernel
            grid=(1,),
            in_specs=[
                pl.BlockSpec((B, D), lambda i, b: (0, 0)),  # x, full block
                pl.BlockSpec((1, D), lambda i, b: (0, 0)),  # weight row, lane-dense
            ],
            out_specs=pl.BlockSpec((B, _OUT_LANES), lambda i, b: (0, 0)),
        ),
        compiler_params=pltpu.CompilerParams(
            dimension_semantics=("arbitrary",),
        ),
    )(bias, x_flat, weight)
    # Slice the valid class column out of the lane-dense slab.
    return padded[:, :C]


if __name__ == "__main__":
    # Small shapes consistent with the module: img_size=16, num_classes=1
    B, IMG, NUM_CLASSES = 2, 16, 1
    D = IMG * IMG * 3

    key = jax.random.PRNGKey(0)
    kx, kw, kb = jax.random.split(key, 3)

    # Deterministic synthetic parameters in torch nn.Linear layout:
    # weight (out_features, in_features), bias (out_features,)
    bound = 1.0 / jnp.sqrt(jnp.float32(D))
    weight = jax.random.uniform(kw, (NUM_CLASSES, D), jnp.float32, -bound, bound)
    bias = jax.random.uniform(kb, (NUM_CLASSES,), jnp.float32, -bound, bound)

    # Input image batch, NCHW
    x = jax.random.normal(kx, (B, 3, IMG, IMG), jnp.float32)

    out = idiot_predictor_forward(x, weight, bias)
    out = jax.block_until_ready(out)

    # Reference check in plain JAX (same math as the PyTorch module)
    ref = jax.nn.sigmoid(x.reshape(B, -1) @ weight.T + bias[None, :])
    assert out.shape == (B, NUM_CLASSES)
    # approx=True reciprocal on the EUP -> slightly looser tolerance than 1e-5
    assert jnp.allclose(out, ref, atol=1e-3, rtol=1e-3), float(jnp.max(jnp.abs(out - ref)))

    print("KERNEL_OK")
</pallas_src>

<mosaic_0001>
module attributes {stable_mosaic.version = 11 : i64} {
  func.func @_idiot_predictor_kernel(%arg0: i32, %arg1: memref<1xf32, #tpu.memory_space<smem>>, %arg2: memref<2x768xf32, #tpu.memory_space<vmem>>, %arg3: memref<1x768xf32, #tpu.memory_space<vmem>>, %arg4: memref<2x128xf32, #tpu.memory_space<vmem>>) attributes {dimension_semantics = [#tpu.dimension_semantics<arbitrary>], iteration_bounds = array<i64: 1>, scalar_prefetch = 1 : i64, scratch_operands = 0 : i64, tpu.core_type = #tpu.core_type<tc>, window_params = [{pipeline_mode = #tpu.pipeline_mode<synchronous>, transform_indices = @transform_0, window_bounds = array<i64: 2, 768>}, {pipeline_mode = #tpu.pipeline_mode<synchronous>, transform_indices = @transform_1, window_bounds = array<i64: 1, 768>}, {pipeline_mode = #tpu.pipeline_mode<synchronous>, transform_indices = @transform_2, window_bounds = array<i64: 2, 128>}]} {
    %c0 = arith.constant 0 : index
    %c0_0 = arith.constant 0 : index
    %0 = vector.load %arg2[%c0, %c0_0] : memref<2x768xf32, #tpu.memory_space<vmem>>, vector<2x768xf32>
    %c0_1 = arith.constant 0 : index
    %c0_2 = arith.constant 0 : index
    %1 = vector.load %arg3[%c0_1, %c0_2] : memref<1x768xf32, #tpu.memory_space<vmem>>, vector<1x768xf32>
    %2 = vector.broadcast %1 : vector<1x768xf32> to vector<2x768xf32>
    %3 = arith.mulf %0, %2 : vector<2x768xf32>
    %cst = arith.constant dense<0.000000e+00> : vector<2xf32>
    %4 = vector.multi_reduction <add>, %3, %cst [1] : vector<2x768xf32> to vector<2xf32>
    %5 = vector.shape_cast %4 : vector<2xf32> to vector<2x1xf32>
    %c0_3 = arith.constant 0 : index
    %6 = memref.load %arg1[%c0_3] : memref<1xf32, #tpu.memory_space<smem>>
    %7 = vector.broadcast %6 : f32 to vector<2x1xf32>
    %8 = arith.addf %5, %7 : vector<2x1xf32>
    %cst_4 = arith.constant 0.000000e+00 : f32
    %9 = vector.broadcast %cst_4 : f32 to vector<2x1xf32>
    %10 = arith.subf %9, %8 : vector<2x1xf32>
    %11 = math.exp %10 : vector<2x1xf32>
    %cst_5 = arith.constant 1.000000e+00 : f32
    %12 = vector.broadcast %cst_5 : f32 to vector<2x1xf32>
    %13 = arith.addf %12, %11 : vector<2x1xf32>
    %14 = tpu.reciprocal %13 {approx = true} : vector<2x1xf32> -> vector<2x1xf32>
    %15 = vector.shape_cast %14 : vector<2x1xf32> to vector<2x1xf32>
    %16 = vector.broadcast %15 : vector<2x1xf32> to vector<2x128xf32>
    %c0_6 = arith.constant 0 : index
    %c0_7 = arith.constant 0 : index
    %17 = vector.load %arg4[%c0_6, %c0_7] : memref<2x128xf32, #tpu.memory_space<vmem>>, vector<2x128xf32>
    tpu.vector_store %arg4[%c0_6, %c0_7], %16 {strides = array<i32>} : memref<2x128xf32, #tpu.memory_space<vmem>>, vector<2x128xf32>,
    return
  }
  func.func @transform_0(%arg0: i32, %arg1: memref<1xf32, #tpu.memory_space<smem>>) -> (i32, i32) {
    %c0_i32 = arith.constant 0 : i32
    %c0_i32_0 = arith.constant 0 : i32
    %c0_i32_1 = arith.constant 0 : i32
    return %c0_i32, %c0_i32_0 : i32, i32
  }
  func.func @transform_1(%arg0: i32, %arg1: memref<1xf32, #tpu.memory_space<smem>>) -> (i32, i32) {
    %c0_i32 = arith.constant 0 : i32
    %c0_i32_0 = arith.constant 0 : i32
    %c0_i32_1 = arith.constant 0 : i32
    return %c0_i32, %c0_i32_0 : i32, i32
  }
  func.func @transform_2(%arg0: i32, %arg1: memref<1xf32, #tpu.memory_space<smem>>) -> (i32, i32) {
    %c0_i32 = arith.constant 0 : i32
    %c0_i32_0 = arith.constant 0 : i32
    %c0_i32_1 = arith.constant 0 : i32
    return %c0_i32, %c0_i32_0 : i32, i32
  }
}

</mosaic_0001>

<llo_original>
// kernel: tpu_custom_call.1
$region0: #{tpu_custom_call.1}
  #allocation0 [shape = 'u32[]', space=smem, size = 0x4, offset = 0x4, fixed_abs, tag = 'smem constant byte address 0x4 - core index']
  #allocation1 [shape = 'u32[144,128]{1,0:T(1,128)}', space=vmem, size = 0x12000, scoped, tag = 'internal scratch']
  #allocation2 [shape = 's32[1]{0}', space=sflag, size = 0x4, scoped, tag = 'scoped memory for tpu_custom_call.1']
  #allocation3 [shape = 'f32[1]{0:T(128)S(6)}', space=smem, size = 0x200, scoped, tag = 'prefetched SMEM operand 0']
  %s0 = inlined_call_operand.<no memory space> [shape: f32[1], index: 0, kind: input, shape index: {}]
  %s1 = inlined_call_operand.hbm [shape: f32[2,768], index: 1, kind: input, shape index: {}]
  %s2 = inlined_call_operand.hbm [shape: f32[1,768], index: 2, kind: input, shape index: {}]
  %s3 = inlined_call_operand.hbm [shape: f32[2,128], index: 3, kind: output, shape index: {}]
  %s4 = sld [smem:[#allocation0]]
  $region26: #{tpu_custom_call.1} parent=0
    _
  %s6 = ssub.s32 1, %s4
  %s7 = scalar_select 0, %s6, %s4
  %8 = sst [smem:[#allocation3]] %s0
  $region1: #{tpu_custom_call.1} parent=0
    #allocation4 [shape = 'u8[6144]{0}', space=vmem, size = 0x1800, scoped, tag = 'input window, operand 1, single buffered']
    #allocation5 [shape = 's32[1]{0}', space=sflag, size = 0x4, scoped, tag = 'scoped memory for tpu_custom_call.1']
    #allocation6 [shape = 's32[1]{0}', space=sflag, size = 0x4, scoped, tag = 'scoped memory for tpu_custom_call.1']
    #allocation7 [shape = 'u8[3072]{0}', space=vmem, size = 0xc00, scoped, tag = 'input window, operand 2, single buffered']
    #allocation8 [shape = 's32[1]{0}', space=sflag, size = 0x4, scoped, tag = 'scoped memory for tpu_custom_call.1']
    #allocation9 [shape = 'u8[1024]{0}', space=vmem, size = 0x400, scoped, tag = 'output window, operand 0, single buffered']
    %9 = vsyncpa [#allocation5], 0
    %10 = vsyncpa [#allocation8], 0
    %11 = vsyncpa [#allocation6], 0
    // Predicated region
    $region2: #{tpu_custom_call.1} parent=1 // pred_check
      _
    $region3: #{tpu_custom_call.1} parent=1 // pred_check_branch
      %13 = sbr.rel (0) target = $region5
    $region4: #{tpu_custom_call.1} parent=1 // pred_region
      %s15 = ssub.s32 192, 192
      %16 = vsyncadd [#allocation5], %s15
      %s18 = sshll.u32 [#allocation4], 4
      %s19 = int_to_ptr.vmem [resolvable:$true] %s18
      %21 = dma.hbm_to_vmem [thread:$0]  %s1, 192, %s19, [#allocation5]
    $region5: #{tpu_custom_call.1} parent=1 // pred_fallthru
      _
    // Predicated region
    $region6: #{tpu_custom_call.1} parent=1 // pred_check
      _
    $region7: #{tpu_custom_call.1} parent=1 // pred_check_branch
      %23 = sbr.rel (0) target = $region9
    $region8: #{tpu_custom_call.1} parent=1 // pred_region
      %s25 = ssub.s32 96, 96
      %26 = vsyncadd [#allocation8], %s25
      %s28 = sshll.u32 [#allocation7], 4
      %s29 = int_to_ptr.vmem [resolvable:$true] %s28
      %31 = dma.hbm_to_vmem [thread:$0]  %s2, 96, %s29, [#allocation8]
    $region9: #{tpu_custom_call.1} parent=1 // pred_fallthru
      _
    // Predicated region
    $region10: #{tpu_custom_call.1} parent=1 // pred_check
      _
    $region11: #{tpu_custom_call.1} parent=1 // pred_check_branch
      %33 = sbr.rel (0) target = $region13
    $region12: #{tpu_custom_call.1} parent=1 // pred_region
      %34 = dma.done [#allocation5], 192
    $region13: #{tpu_custom_call.1} parent=1 // pred_fallthru
      _
    // Predicated region
    $region14: #{tpu_custom_call.1} parent=1 // pred_check
      _
    $region15: #{tpu_custom_call.1} parent=1 // pred_check_branch
      %36 = sbr.rel (0) target = $region17
    $region16: #{tpu_custom_call.1} parent=1 // pred_region
      %37 = dma.done [#allocation8], 96
    $region17: #{tpu_custom_call.1} parent=1 // pred_fallthru
      _
    %v38 = vld [vmem:[#allocation4] sm:$0xff]
    %v39 = vld [vmem:[#allocation4 + $0x8] sm:$0xf]
    %v40 = vld [vmem:[#allocation7] sm:$0x3f]
    %v42 = vlaneseq
    %v43 = vshrl.u32 %v42, 7
    %v44 = vsub.s32 0, %v43
    %v45 = vrot.slane %v40, %v44
    %v46 = vlaneseq
    %v47 = vshrl.u32 %v46, 7
    %v48 = vsub.s32 1, %v47
    %v49 = vrot.slane %v40, %v48
    %v50 = vlaneseq
    %v51 = vshrl.u32 %v50, 7
    %v52 = vsub.s32 2, %v51
    %v53 = vrot.slane %v40, %v52
    %v54 = vlaneseq
    %v55 = vshrl.u32 %v54, 7
    %v56 = vsub.s32 3, %v55
    %v57 = vrot.slane %v40, %v56
    %v58 = vlaneseq
    %v59 = vshrl.u32 %v58, 7
    %v60 = vsub.s32 4, %v59
    %v61 = vrot.slane %v40, %v60
    %v62 = vlaneseq
    %v63 = vshrl.u32 %v62, 7
    %v64 = vsub.s32 5, %v63
    %v65 = vrot.slane %v40, %v64
    %v66 = vcombine.low %v45, %v49
    %v67 = vcombine.low %v53, %v57
    %v69 = vunpack.c.l.s4 1983009808
    %v70 = vunpack.c.0.s8 %v69
    %v71 = vlaneseq
    %v72 = vshrl.u32 %v71, 7
    %v73 = vsub.s32 %v70, %v72
    %v74 = vrot.slane %v66, %v73
    %v76 = vunpack.c.l.s4 1983009808
    %v77 = vunpack.c.0.s8 %v76
    %v78 = vlaneseq
    %v79 = vshrl.u32 %v78, 7
    %v80 = vsub.s32 %v77, %v79
    %v81 = vrot.slane %v67, %v80
    %v82 = vcombine.low %v74, %v81
    %v83 = vcombine.low %v61, %v65
    %v85 = vunpack.c.l.s4 1983009808
    %v86 = vunpack.c.0.s8 %v85
    %v87 = vlaneseq
    %v88 = vshrl.u32 %v87, 7
    %v89 = vsub.s32 %v86, %v88
    %v90 = vrot.slane %v83, %v89
    %v93 = vmul.f32 %v38, %v82
    %v94 = vmul.f32 %v39, %v90
    %v97 = vcombine.high %v93, %v93
    %v99 = vunpack.c.l.s4 1983009808
    %v100 = vunpack.c.0.s8 %v99
    %v101 = vlaneseq
    %v102 = vshrl.u32 %v101, 7
    %v103 = vsub.s32 %v100, %v102
    %v104 = vrot.slane %v93, %v103
    %v106 = vunpack.c.l.s4 1983009808
    %v107 = vunpack.c.0.s8 %v106
    %v108 = vlaneseq
    %v109 = vshrl.u32 %v108, 7
    %v110 = vsub.s32 %v107, %v109
    %v111 = vrot.slane %v97, %v110
    %v112 = vcombine.high %v104, %v104
    %v113 = vcombine.high %v111, %v111
    %v115 = vunpack.c.l.s4 1983009808
    %v116 = vunpack.c.0.s8 %v115
    %v117 = vlaneseq
    %v118 = vshrl.u32 %v117, 7
    %v119 = vsub.s32 %v116, %v118
    %v120 = vrot.slane %v94, %v119
    %v121 = vcombine.high %v120, %v120
    %vm128 = vcmask 1041408
    %v129 = vsel %vm128, %v104, 0.0
    %v130 = vsel %vm128, %v112, 0.0
    %v131 = vadd.f32 %v129, %v130
    %v132 = vsel %vm128, %v111, 0.0
    %v133 = vadd.f32 %v131, %v132
    %v134 = vsel %vm128, %v113, 0.0
    %v135 = vadd.f32 %v133, %v134
    %v136 = vsel %vm128, %v120, 0.0
    %v137 = vadd.f32 %v135, %v136
    %v138 = vsel %vm128, %v121, 0.0
    %v139 = vadd.f32 %v137, %v138
    %140 = vadd.xlane.f32.xlu0 %v139
    %v141 = vpop.xlane.xlu0 %140
    %s142 = sld [smem:[#allocation3]]
    %v143 = vstv %s142
    %v144 = vadd.f32 %v141, %v143
    %v145 = vsub.f32 0.0, %v144
    %v146 = vmul.f32 %v145, 1.442695
    %v147 = vpow.pop %v146
    %v148 = vadd.f32 %v147, 1.0
    %v149 = vrcp.pop %v148
    %150 = vst [vmem:[#allocation9] sm:$0x3] %v149
    // Predicated region
    $region18: #{tpu_custom_call.1} parent=1 // pred_check
      _
    $region19: #{tpu_custom_call.1} parent=1 // pred_check_branch
      %152 = sbr.rel (0) target = $region21
    $region20: #{tpu_custom_call.1} parent=1 // pred_region
      %s154 = ssub.s32 32, 32
      %155 = vsyncadd [#allocation6], %s154
      %s157 = sshll.u32 [#allocation9], 4
      %s158 = int_to_ptr.vmem [resolvable:$true] %s157
      %160 = dma.vmem_to_hbm [thread:$0]  %s158, 32, %s3, [#allocation6]
    $region21: #{tpu_custom_call.1} parent=1 // pred_fallthru
      _
    // Predicated region
    $region22: #{tpu_custom_call.1} parent=1 // pred_check
      _
    $region23: #{tpu_custom_call.1} parent=1 // pred_check_branch
      %162 = sbr.rel (0) target = $region25
    $region24: #{tpu_custom_call.1} parent=1 // pred_region
      %163 = dma.done [#allocation6], 32
    $region25: #{tpu_custom_call.1} parent=1 // pred_fallthru
      _
    %164 = vsyncpa [#allocation5], 1
    %165 = vsyncpa [#allocation8], 1
    %166 = vsyncpa [#allocation6], 1

</llo_original>
